<compile_context>
chip_gen: v5e
topology: v5e:2x2
jax: 0.10.0
libtpu: 0.0.40
codegen_flags: <defaults>
</compile_context>

<pallas_src>
import functools

import numpy as np
import jax
import jax.numpy as jnp
from jax.experimental import pallas as pl
from jax.experimental.pallas import tpu as pltpu

BINS = 10
MOMENTUM = 0.9
_LANES = 128
_PAD_LOGIT = -40.0   # sigmoid(-40) ~ 4e-18 -> bin 0; log(1 + e^-40) == 0 in f32.


def _round_up(x, m):
    return ((x + m - 1) // m) * m


def _ghm_kernel(pred_ref, target_ref, cnt_ref, bce_ref, *,
                bins, tile_rows, chunk_rows):
    """Accumulates per-bin (count, bce-sum) partials.

    cnt_ref / bce_ref are (bins*8, 128) f32 accumulators revisited by every
    grid step: bin i owns the aligned row band [8i, 8i+8), each of whose
    8*128 slots holds an independent partial sum (the lane reduce happens in
    the wrapper).  All hot-loop accumulation is therefore full-vreg adds.
    """
    step = pl.program_id(0)

    @pl.when(step == 0)
    def _init():
        cnt_ref[...] = jnp.zeros_like(cnt_ref)
        bce_ref[...] = jnp.zeros_like(bce_ref)

    num_chunks = tile_rows // chunk_rows
    sub = chunk_rows // 8

    # Statically unrolled chunk loop (equivalent to lax.fori_loop(unroll=True))
    # keeps bce / bin_idx register-resident across the 10-bin histogram loop.
    for c in range(num_chunks):
        r0 = c * chunk_rows
        p = pred_ref[r0:r0 + chunk_rows, :].astype(jnp.float32)
        t = target_ref[r0:r0 + chunk_rows, :].astype(jnp.float32)

        # One shared transcendental drives both sigmoid and the stable BCE
        # log term; the divide goes to the (otherwise idle) EUP.
        e = jnp.exp(-jnp.abs(p))
        inv = pl.reciprocal(1.0 + e, approx=True)
        sig = jnp.where(p >= 0.0, inv, e * inv)          # sigmoid(pred)
        g = jnp.abs(sig - t)
        # TODO(synk): jnp.log1p would be marginally more accurate for tiny e;
        #             kept as log(1+e) for guaranteed Mosaic lowering.
        bce = jnp.maximum(p, 0.0) - p * t + jnp.log(1.0 + e)

        # Single clamped bin index reproduces the border[-1] += 1e-6 rule.
        bin_idx = jnp.minimum((g * float(bins)).astype(jnp.int32), bins - 1)

        # (chunk, 128) -> (sub, 8, 128): sublane-preserving split, so the
        # axis-0 partial sums below are pure vreg adds (no XLU reduce).
        idx3 = bin_idx.reshape(sub, 8, _LANES)
        bce3 = bce.reshape(sub, 8, _LANES)
        for i in range(bins):                            # static, unrolled
            m = idx3 == i
            cnt_ref[i * 8:(i + 1) * 8, :] += jnp.sum(
                m.astype(jnp.float32), axis=0)
            bce_ref[i * 8:(i + 1) * 8, :] += jnp.sum(
                jnp.where(m, bce3, 0.0), axis=0)


def ghm_loss(pred, target, acc_sum, *, bins=BINS, momentum=MOMENTUM,
             tile_rows=2048, chunk_rows=128):
    """Returns (scalar loss, updated acc_sum of shape (bins,)). Forward only."""
    tot = float(max(target.shape[0], 1.0))

    pred = jnp.asarray(pred)
    p = (pred if pred.dtype == jnp.bfloat16
         else pred.astype(jnp.float32)).reshape(-1)
    # 0/1 labels are exact in bf16; halves target HBM traffic (v5e is
    # mem-bound once the histogram compute is fixed).
    # TODO(synk): keep f32 here if soft (non-{0,1}) targets must be exact.
    t = jnp.asarray(target).astype(jnp.bfloat16).reshape(-1)

    n_elem = int(p.shape[0])
    rows = max(-(-n_elem // _LANES), 1)
    cr = _round_up(min(int(chunk_rows), rows), 8)
    tr = _round_up(min(int(tile_rows), rows), cr)
    rows_pad = _round_up(rows, tr)
    total = rows_pad * _LANES
    pad_count = total - n_elem

    # Pads (logit -40, target 0) land in bin 0 with exactly-zero BCE; the
    # statically known pad count is subtracted from bin 0 below, so no mask
    # is needed in the hot loop.
    p = jnp.pad(p, (0, pad_count), constant_values=_PAD_LOGIT)
    t = jnp.pad(t, (0, pad_count))
    p = p.reshape(rows_pad, _LANES)
    t = t.reshape(rows_pad, _LANES)

    num_tiles = rows_pad // tr
    kernel = functools.partial(_ghm_kernel, bins=bins, tile_rows=tr,
                               chunk_rows=cr)

    cnt_part, bce_part = pl.pallas_call(
        kernel,
        out_shape=(jax.ShapeDtypeStruct((bins * 8, _LANES), jnp.float32),
                   jax.ShapeDtypeStruct((bins * 8, _LANES), jnp.float32)),
        grid_spec=pltpu.PrefetchScalarGridSpec(
            num_scalar_prefetch=0,
            grid=(num_tiles,),
            in_specs=[pl.BlockSpec((tr, _LANES), lambda i: (i, 0)),
                      pl.BlockSpec((tr, _LANES), lambda i: (i, 0))],
            out_specs=(pl.BlockSpec((bins * 8, _LANES), lambda i: (0, 0)),
                       pl.BlockSpec((bins * 8, _LANES), lambda i: (0, 0)))),
        compiler_params=pltpu.CompilerParams(
            dimension_semantics=("arbitrary",)),
    )(p, t)

    # O(bins) epilogue in plain JAX: single lane reduce + momentum / weights.
    cnt = jnp.sum(cnt_part.reshape(bins, 8 * _LANES), axis=1)
    bsum = jnp.sum(bce_part.reshape(bins, 8 * _LANES), axis=1)
    cnt = cnt.at[0].add(-float(pad_count))     # remove padding from bin 0

    acc_in = jnp.asarray(acc_sum, jnp.float32).reshape(-1)
    has = cnt > 0.0
    if momentum > 0:
        acc_new = jnp.where(has, momentum * acc_in + (1.0 - momentum) * cnt,
                            acc_in)
        denom = acc_new
    else:
        acc_new = acc_in
        denom = cnt
    w = jnp.where(has, tot / jnp.where(has, denom, 1.0), 0.0)
    n = jnp.maximum(jnp.sum(has.astype(jnp.float32)), 1.0)
    loss = jnp.sum(w * bsum) / (n * tot)
    return loss, acc_new


def _numpy_reference(pred, target, acc_sum, bins=BINS, momentum=MOMENTUM):
    p = np.asarray(pred, np.float32)
    t = np.asarray(target, np.float32)
    acc = np.array(acc_sum, np.float32).reshape(-1).copy()
    borders = np.arange(bins + 1, dtype=np.float32) / np.float32(bins)
    borders[-1] += np.float32(1e-6)
    g = np.abs(1.0 / (1.0 + np.exp(-p)) - t)
    weights = np.zeros_like(p)
    tot = max(p.shape[0], 1.0)
    n = 0
    for i in range(bins):
        m = (g >= borders[i]) & (g < borders[i + 1])
        num = m.sum()
        if num > 0:
            if momentum > 0:
                acc[i] = momentum * acc[i] + (1 - momentum) * num
                weights[m] = tot / acc[i]
            else:
                weights[m] = tot / num
            n += 1
    if n > 0:
        weights = weights / n
    bce = np.maximum(p, 0) - p * t + np.log1p(np.exp(-np.abs(p)))
    return float((weights * bce).sum() / tot), acc


def _make_inputs(key, shape, bins=BINS):
    """Deterministic logits whose sigmoid stays >=0.015 away from every bin
    border, so float rounding (incl. the approx reciprocal) can never flip a
    histogram bin between the kernel and the reference."""
    k1, k2 = jax.random.split(key)
    u = jax.random.uniform(k1, shape, dtype=jnp.float32)
    cell = jnp.floor(u * bins)
    frac = u * bins - cell
    s = (cell + 0.15 + 0.7 * frac) / bins
    s = jnp.clip(s, 1e-4, 1.0 - 1e-4)
    pred = jnp.log(s / (1.0 - s))
    target = (jax.random.uniform(k2, shape) > 0.5).astype(jnp.float32)
    return pred, target


if __name__ == "__main__":
    acc0 = jnp.zeros((BINS,), jnp.float32)

    # Small classification-head shape: batch=8, classes=32 (single chunk).
    pred, target = _make_inputs(jax.random.PRNGKey(0), (8, 32))
    loss, acc_new = jax.block_until_ready(ghm_loss(pred, target, acc0))
    ref_loss, ref_acc = _numpy_reference(np.asarray(pred), np.asarray(target),
                                         np.zeros(BINS, np.float32))
    assert np.allclose(float(loss), ref_loss, rtol=1e-4, atol=1e-5), \
        (float(loss), ref_loss)
    assert np.allclose(np.asarray(acc_new), ref_acc, rtol=1e-4, atol=1e-4)

    # Multi-tile / multi-chunk path (4 grid steps x 2 chunks).
    pred2, target2 = _make_inputs(jax.random.PRNGKey(1), (64, 100))
    loss2, acc2 = jax.block_until_ready(
        ghm_loss(pred2, target2, acc0, tile_rows=16, chunk_rows=8))
    ref_loss2, ref_acc2 = _numpy_reference(np.asarray(pred2),
                                           np.asarray(target2),
                                           np.zeros(BINS, np.float32))
    assert np.allclose(float(loss2), ref_loss2, rtol=1e-4, atol=1e-5), \
        (float(loss2), ref_loss2)
    assert np.allclose(np.asarray(acc2), ref_acc2, rtol=1e-4, atol=1e-4)

    # Default tiling path (one tile, two 128-row chunks, padded tail).
    pred3, target3 = _make_inputs(jax.random.PRNGKey(2), (512, 40))
    loss3, acc3 = jax.block_until_ready(ghm_loss(pred3, target3, acc0))
    ref_loss3, ref_acc3 = _numpy_reference(np.asarray(pred3),
                                           np.asarray(target3),
                                           np.zeros(BINS, np.float32))
    assert np.allclose(float(loss3), ref_loss3, rtol=1e-4, atol=1e-5), \
        (float(loss3), ref_loss3)
    assert np.allclose(np.asarray(acc3), ref_acc3, rtol=1e-4, atol=1e-4)

    print("KERNEL_OK")
</pallas_src>

<mosaic_0001>
module attributes {stable_mosaic.version = 11 : i64} {
  func.func @_ghm_kernel(%arg0: i32, %arg1: memref<8x128xf32, #tpu.memory_space<vmem>>, %arg2: memref<8x128xbf16, #tpu.memory_space<vmem>>, %arg3: memref<80x128xf32, #tpu.memory_space<vmem>>, %arg4: memref<80x128xf32, #tpu.memory_space<vmem>>) attributes {dimension_semantics = [#tpu.dimension_semantics<arbitrary>], iteration_bounds = array<i64: 1>, scalar_prefetch = 0 : i64, scratch_operands = 0 : i64, tpu.core_type = #tpu.core_type<tc>, window_params = [{transform_indices = @transform_0, window_bounds = array<i64: 8, 128>}, {transform_indices = @transform_1, window_bounds = array<i64: 8, 128>}, {pipeline_mode = #tpu.pipeline_mode<synchronous>, transform_indices = @transform_2, window_bounds = array<i64: 80, 128>}, {pipeline_mode = #tpu.pipeline_mode<synchronous>, transform_indices = @transform_3, window_bounds = array<i64: 80, 128>}]} {
    %c0_i32 = arith.constant 0 : i32
    %0 = arith.cmpi eq, %arg0, %c0_i32 : i32
    %1 = arith.extui %0 : i1 to i32
    %c0_i32_0 = arith.constant 0 : i32
    %2 = arith.cmpi ne, %1, %c0_i32_0 : i32
    scf.if %2 {
      %cst_112 = arith.constant 0.000000e+00 : f32
      %174 = vector.broadcast %cst_112 : f32 to vector<80x128xf32>
      %c0_113 = arith.constant 0 : index
      %c0_114 = arith.constant 0 : index
      %175 = vector.load %arg3[%c0_113, %c0_114] : memref<80x128xf32, #tpu.memory_space<vmem>>, vector<80x128xf32>
      tpu.vector_store %arg3[%c0_113, %c0_114], %174 {strides = array<i32>} : memref<80x128xf32, #tpu.memory_space<vmem>>, vector<80x128xf32>,
      %cst_115 = arith.constant 0.000000e+00 : f32
      %176 = vector.broadcast %cst_115 : f32 to vector<80x128xf32>
      %c0_116 = arith.constant 0 : index
      %c0_117 = arith.constant 0 : index
      %177 = vector.load %arg4[%c0_116, %c0_117] : memref<80x128xf32, #tpu.memory_space<vmem>>, vector<80x128xf32>
      tpu.vector_store %arg4[%c0_116, %c0_117], %176 {strides = array<i32>} : memref<80x128xf32, #tpu.memory_space<vmem>>, vector<80x128xf32>,
    } else {
    }
    %c0 = arith.constant 0 : index
    %c0_1 = arith.constant 0 : index
    %3 = vector.load %arg1[%c0, %c0_1] : memref<8x128xf32, #tpu.memory_space<vmem>>, vector<8x128xf32>
    %c0_2 = arith.constant 0 : index
    %c0_3 = arith.constant 0 : index
    %4 = vector.load %arg2[%c0_2, %c0_3] : memref<8x128xbf16, #tpu.memory_space<vmem>>, vector<8x128xbf16>
    %5 = arith.extf %4 : vector<8x128xbf16> to vector<8x128xf32>
    %6 = math.absf %3 : vector<8x128xf32>
    %cst = arith.constant 0.000000e+00 : f32
    %7 = vector.broadcast %cst : f32 to vector<8x128xf32>
    %8 = arith.subf %7, %6 : vector<8x128xf32>
    %9 = math.exp %8 : vector<8x128xf32>
    %cst_4 = arith.constant 1.000000e+00 : f32
    %10 = vector.broadcast %cst_4 : f32 to vector<8x128xf32>
    %11 = arith.addf %10, %9 : vector<8x128xf32>
    %12 = tpu.reciprocal %11 {approx = true} : vector<8x128xf32> -> vector<8x128xf32>
    %cst_5 = arith.constant 0.000000e+00 : f32
    %13 = vector.broadcast %cst_5 : f32 to vector<8x128xf32>
    %14 = arith.cmpf oge, %3, %13 : vector<8x128xf32>
    %15 = arith.mulf %9, %12 : vector<8x128xf32>
    %16 = arith.select %14, %12, %15 : vector<8x128xi1>, vector<8x128xf32>
    %17 = arith.subf %16, %5 : vector<8x128xf32>
    %18 = math.absf %17 : vector<8x128xf32>
    %cst_6 = arith.constant 0.000000e+00 : f32
    %19 = vector.broadcast %cst_6 : f32 to vector<8x128xf32>
    %20 = arith.maximumf %3, %19 : vector<8x128xf32>
    %21 = arith.mulf %3, %5 : vector<8x128xf32>
    %22 = arith.subf %20, %21 : vector<8x128xf32>
    %cst_7 = arith.constant 1.000000e+00 : f32
    %23 = vector.broadcast %cst_7 : f32 to vector<8x128xf32>
    %24 = arith.addf %23, %9 : vector<8x128xf32>
    %25 = math.log %24 : vector<8x128xf32>
    %26 = arith.addf %22, %25 : vector<8x128xf32>
    %cst_8 = arith.constant 1.000000e+01 : f32
    %27 = vector.broadcast %cst_8 : f32 to vector<8x128xf32>
    %28 = arith.mulf %18, %27 : vector<8x128xf32>
    %29 = arith.fptosi %28 : vector<8x128xf32> to vector<8x128xi32>
    %c9_i32 = arith.constant 9 : i32
    %30 = vector.broadcast %c9_i32 : i32 to vector<8x128xi32>
    %31 = arith.minsi %29, %30 : vector<8x128xi32>
    %32 = vector.shape_cast %31 : vector<8x128xi32> to vector<1x8x128xi32>
    %33 = vector.shape_cast %26 : vector<8x128xf32> to vector<1x8x128xf32>
    %c0_i32_9 = arith.constant 0 : i32
    %34 = vector.broadcast %c0_i32_9 : i32 to vector<1x8x128xi32>
    %35 = arith.cmpi eq, %32, %34 : vector<1x8x128xi32>
    %c0_10 = arith.constant 0 : index
    %c0_11 = arith.constant 0 : index
    %36 = vector.load %arg3[%c0_10, %c0_11] : memref<80x128xf32, #tpu.memory_space<vmem>>, vector<8x128xf32>
    %37 = arith.extui %35 : vector<1x8x128xi1> to vector<1x8x128xi32>
    %38 = arith.sitofp %37 : vector<1x8x128xi32> to vector<1x8x128xf32>
    %cst_12 = arith.constant dense<0.000000e+00> : vector<8x128xf32>
    %39 = vector.multi_reduction <add>, %38, %cst_12 [0] : vector<1x8x128xf32> to vector<8x128xf32>
    %40 = arith.addf %36, %39 : vector<8x128xf32>
    %c0_13 = arith.constant 0 : index
    %c0_14 = arith.constant 0 : index
    %41 = vector.load %arg3[%c0_13, %c0_14] : memref<80x128xf32, #tpu.memory_space<vmem>>, vector<8x128xf32>
    tpu.vector_store %arg3[%c0_13, %c0_14], %40 {strides = array<i32>} : memref<80x128xf32, #tpu.memory_space<vmem>>, vector<8x128xf32>,
    %c0_15 = arith.constant 0 : index
    %c0_16 = arith.constant 0 : index
    %42 = vector.load %arg4[%c0_15, %c0_16] : memref<80x128xf32, #tpu.memory_space<vmem>>, vector<8x128xf32>
    %cst_17 = arith.constant 0.000000e+00 : f32
    %43 = vector.broadcast %cst_17 : f32 to vector<1x8x128xf32>
    %44 = arith.select %35, %33, %43 : vector<1x8x128xi1>, vector<1x8x128xf32>
    %cst_18 = arith.constant dense<0.000000e+00> : vector<8x128xf32>
    %45 = vector.multi_reduction <add>, %44, %cst_18 [0] : vector<1x8x128xf32> to vector<8x128xf32>
    %46 = arith.addf %42, %45 : vector<8x128xf32>
    %c0_19 = arith.constant 0 : index
    %c0_20 = arith.constant 0 : index
    %47 = vector.load %arg4[%c0_19, %c0_20] : memref<80x128xf32, #tpu.memory_space<vmem>>, vector<8x128xf32>
    tpu.vector_store %arg4[%c0_19, %c0_20], %46 {strides = array<i32>} : memref<80x128xf32, #tpu.memory_space<vmem>>, vector<8x128xf32>,
    %c1_i32 = arith.constant 1 : i32
    %48 = vector.broadcast %c1_i32 : i32 to vector<1x8x128xi32>
    %49 = arith.cmpi eq, %32, %48 : vector<1x8x128xi32>
    %c8 = arith.constant 8 : index
    %c0_21 = arith.constant 0 : index
    %50 = vector.load %arg3[%c8, %c0_21] : memref<80x128xf32, #tpu.memory_space<vmem>>, vector<8x128xf32>
    %51 = arith.extui %49 : vector<1x8x128xi1> to vector<1x8x128xi32>
    %52 = arith.sitofp %51 : vector<1x8x128xi32> to vector<1x8x128xf32>
    %cst_22 = arith.constant dense<0.000000e+00> : vector<8x128xf32>
    %53 = vector.multi_reduction <add>, %52, %cst_22 [0] : vector<1x8x128xf32> to vector<8x128xf32>
    %54 = arith.addf %50, %53 : vector<8x128xf32>
    %c8_23 = arith.constant 8 : index
    %c0_24 = arith.constant 0 : index
    %55 = vector.load %arg3[%c8_23, %c0_24] : memref<80x128xf32, #tpu.memory_space<vmem>>, vector<8x128xf32>
    tpu.vector_store %arg3[%c8_23, %c0_24], %54 {strides = array<i32>} : memref<80x128xf32, #tpu.memory_space<vmem>>, vector<8x128xf32>,
    %c8_25 = arith.constant 8 : index
    %c0_26 = arith.constant 0 : index
    %56 = vector.load %arg4[%c8_25, %c0_26] : memref<80x128xf32, #tpu.memory_space<vmem>>, vector<8x128xf32>
    %cst_27 = arith.constant 0.000000e+00 : f32
    %57 = vector.broadcast %cst_27 : f32 to vector<1x8x128xf32>
    %58 = arith.select %49, %33, %57 : vector<1x8x128xi1>, vector<1x8x128xf32>
    %cst_28 = arith.constant dense<0.000000e+00> : vector<8x128xf32>
    %59 = vector.multi_reduction <add>, %58, %cst_28 [0] : vector<1x8x128xf32> to vector<8x128xf32>
    %60 = arith.addf %56, %59 : vector<8x128xf32>
    %c8_29 = arith.constant 8 : index
    %c0_30 = arith.constant 0 : index
    %61 = vector.load %arg4[%c8_29, %c0_30] : memref<80x128xf32, #tpu.memory_space<vmem>>, vector<8x128xf32>
    tpu.vector_store %arg4[%c8_29, %c0_30], %60 {strides = array<i32>} : memref<80x128xf32, #tpu.memory_space<vmem>>, vector<8x128xf32>,
    %c2_i32 = arith.constant 2 : i32
    %62 = vector.broadcast %c2_i32 : i32 to vector<1x8x128xi32>
    %63 = arith.cmpi eq, %32, %62 : vector<1x8x128xi32>
    %c16 = arith.constant 16 : index
    %c0_31 = arith.constant 0 : index
    %64 = vector.load %arg3[%c16, %c0_31] : memref<80x128xf32, #tpu.memory_space<vmem>>, vector<8x128xf32>
    %65 = arith.extui %63 : vector<1x8x128xi1> to vector<1x8x128xi32>
    %66 = arith.sitofp %65 : vector<1x8x128xi32> to vector<1x8x128xf32>
    %cst_32 = arith.constant dense<0.000000e+00> : vector<8x128xf32>
    %67 = vector.multi_reduction <add>, %66, %cst_32 [0] : vector<1x8x128xf32> to vector<8x128xf32>
    %68 = arith.addf %64, %67 : vector<8x128xf32>
    %c16_33 = arith.constant 16 : index
    %c0_34 = arith.constant 0 : index
    %69 = vector.load %arg3[%c16_33, %c0_34] : memref<80x128xf32, #tpu.memory_space<vmem>>, vector<8x128xf32>
    tpu.vector_store %arg3[%c16_33, %c0_34], %68 {strides = array<i32>} : memref<80x128xf32, #tpu.memory_space<vmem>>, vector<8x128xf32>,
    %c16_35 = arith.constant 16 : index
    %c0_36 = arith.constant 0 : index
    %70 = vector.load %arg4[%c16_35, %c0_36] : memref<80x128xf32, #tpu.memory_space<vmem>>, vector<8x128xf32>
    %cst_37 = arith.constant 0.000000e+00 : f32
    %71 = vector.broadcast %cst_37 : f32 to vector<1x8x128xf32>
    %72 = arith.select %63, %33, %71 : vector<1x8x128xi1>, vector<1x8x128xf32>
    %cst_38 = arith.constant dense<0.000000e+00> : vector<8x128xf32>
    %73 = vector.multi_reduction <add>, %72, %cst_38 [0] : vector<1x8x128xf32> to vector<8x128xf32>
    %74 = arith.addf %70, %73 : vector<8x128xf32>
    %c16_39 = arith.constant 16 : index
    %c0_40 = arith.constant 0 : index
    %75 = vector.load %arg4[%c16_39, %c0_40] : memref<80x128xf32, #tpu.memory_space<vmem>>, vector<8x128xf32>
    tpu.vector_store %arg4[%c16_39, %c0_40], %74 {strides = array<i32>} : memref<80x128xf32, #tpu.memory_space<vmem>>, vector<8x128xf32>,
    %c3_i32 = arith.constant 3 : i32
    %76 = vector.broadcast %c3_i32 : i32 to vector<1x8x128xi32>
    %77 = arith.cmpi eq, %32, %76 : vector<1x8x128xi32>
    %c24 = arith.constant 24 : index
    %c0_41 = arith.constant 0 : index
    %78 = vector.load %arg3[%c24, %c0_41] : memref<80x128xf32, #tpu.memory_space<vmem>>, vector<8x128xf32>
    %79 = arith.extui %77 : vector<1x8x128xi1> to vector<1x8x128xi32>
    %80 = arith.sitofp %79 : vector<1x8x128xi32> to vector<1x8x128xf32>
    %cst_42 = arith.constant dense<0.000000e+00> : vector<8x128xf32>
    %81 = vector.multi_reduction <add>, %80, %cst_42 [0] : vector<1x8x128xf32> to vector<8x128xf32>
    %82 = arith.addf %78, %81 : vector<8x128xf32>
    %c24_43 = arith.constant 24 : index
    %c0_44 = arith.constant 0 : index
    %83 = vector.load %arg3[%c24_43, %c0_44] : memref<80x128xf32, #tpu.memory_space<vmem>>, vector<8x128xf32>
    tpu.vector_store %arg3[%c24_43, %c0_44], %82 {strides = array<i32>} : memref<80x128xf32, #tpu.memory_space<vmem>>, vector<8x128xf32>,
    %c24_45 = arith.constant 24 : index
    %c0_46 = arith.constant 0 : index
    %84 = vector.load %arg4[%c24_45, %c0_46] : memref<80x128xf32, #tpu.memory_space<vmem>>, vector<8x128xf32>
    %cst_47 = arith.constant 0.000000e+00 : f32
    %85 = vector.broadcast %cst_47 : f32 to vector<1x8x128xf32>
    %86 = arith.select %77, %33, %85 : vector<1x8x128xi1>, vector<1x8x128xf32>
    %cst_48 = arith.constant dense<0.000000e+00> : vector<8x128xf32>
    %87 = vector.multi_reduction <add>, %86, %cst_48 [0] : vector<1x8x128xf32> to vector<8x128xf32>
    %88 = arith.addf %84, %87 : vector<8x128xf32>
    %c24_49 = arith.constant 24 : index
    %c0_50 = arith.constant 0 : index
    %89 = vector.load %arg4[%c24_49, %c0_50] : memref<80x128xf32, #tpu.memory_space<vmem>>, vector<8x128xf32>
    tpu.vector_store %arg4[%c24_49, %c0_50], %88 {strides = array<i32>} : memref<80x128xf32, #tpu.memory_space<vmem>>, vector<8x128xf32>,
    %c4_i32 = arith.constant 4 : i32
    %90 = vector.broadcast %c4_i32 : i32 to vector<1x8x128xi32>
    %91 = arith.cmpi eq, %32, %90 : vector<1x8x128xi32>
    %c32 = arith.constant 32 : index
    %c0_51 = arith.constant 0 : index
    %92 = vector.load %arg3[%c32, %c0_51] : memref<80x128xf32, #tpu.memory_space<vmem>>, vector<8x128xf32>
    %93 = arith.extui %91 : vector<1x8x128xi1> to vector<1x8x128xi32>
    %94 = arith.sitofp %93 : vector<1x8x128xi32> to vector<1x8x128xf32>
    %cst_52 = arith.constant dense<0.000000e+00> : vector<8x128xf32>
    %95 = vector.multi_reduction <add>, %94, %cst_52 [0] : vector<1x8x128xf32> to vector<8x128xf32>
    %96 = arith.addf %92, %95 : vector<8x128xf32>
    %c32_53 = arith.constant 32 : index
    %c0_54 = arith.constant 0 : index
    %97 = vector.load %arg3[%c32_53, %c0_54] : memref<80x128xf32, #tpu.memory_space<vmem>>, vector<8x128xf32>
    tpu.vector_store %arg3[%c32_53, %c0_54], %96 {strides = array<i32>} : memref<80x128xf32, #tpu.memory_space<vmem>>, vector<8x128xf32>,
    %c32_55 = arith.constant 32 : index
    %c0_56 = arith.constant 0 : index
    %98 = vector.load %arg4[%c32_55, %c0_56] : memref<80x128xf32, #tpu.memory_space<vmem>>, vector<8x128xf32>
    %cst_57 = arith.constant 0.000000e+00 : f32
    %99 = vector.broadcast %cst_57 : f32 to vector<1x8x128xf32>
    %100 = arith.select %91, %33, %99 : vector<1x8x128xi1>, vector<1x8x128xf32>
    %cst_58 = arith.constant dense<0.000000e+00> : vector<8x128xf32>
    %101 = vector.multi_reduction <add>, %100, %cst_58 [0] : vector<1x8x128xf32> to vector<8x128xf32>
    %102 = arith.addf %98, %101 : vector<8x128xf32>
    %c32_59 = arith.constant 32 : index
    %c0_60 = arith.constant 0 : index
    %103 = vector.load %arg4[%c32_59, %c0_60] : memref<80x128xf32, #tpu.memory_space<vmem>>, vector<8x128xf32>
    tpu.vector_store %arg4[%c32_59, %c0_60], %102 {strides = array<i32>} : memref<80x128xf32, #tpu.memory_space<vmem>>, vector<8x128xf32>,
    %c5_i32 = arith.constant 5 : i32
    %104 = vector.broadcast %c5_i32 : i32 to vector<1x8x128xi32>
    %105 = arith.cmpi eq, %32, %104 : vector<1x8x128xi32>
    %c40 = arith.constant 40 : index
    %c0_61 = arith.constant 0 : index
    %106 = vector.load %arg3[%c40, %c0_61] : memref<80x128xf32, #tpu.memory_space<vmem>>, vector<8x128xf32>
    %107 = arith.extui %105 : vector<1x8x128xi1> to vector<1x8x128xi32>
    %108 = arith.sitofp %107 : vector<1x8x128xi32> to vector<1x8x128xf32>
    %cst_62 = arith.constant dense<0.000000e+00> : vector<8x128xf32>
    %109 = vector.multi_reduction <add>, %108, %cst_62 [0] : vector<1x8x128xf32> to vector<8x128xf32>
    %110 = arith.addf %106, %109 : vector<8x128xf32>
    %c40_63 = arith.constant 40 : index
    %c0_64 = arith.constant 0 : index
    %111 = vector.load %arg3[%c40_63, %c0_64] : memref<80x128xf32, #tpu.memory_space<vmem>>, vector<8x128xf32>
    tpu.vector_store %arg3[%c40_63, %c0_64], %110 {strides = array<i32>} : memref<80x128xf32, #tpu.memory_space<vmem>>, vector<8x128xf32>,
    %c40_65 = arith.constant 40 : index
    %c0_66 = arith.constant 0 : index
    %112 = vector.load %arg4[%c40_65, %c0_66] : memref<80x128xf32, #tpu.memory_space<vmem>>, vector<8x128xf32>
    %cst_67 = arith.constant 0.000000e+00 : f32
    %113 = vector.broadcast %cst_67 : f32 to vector<1x8x128xf32>
    %114 = arith.select %105, %33, %113 : vector<1x8x128xi1>, vector<1x8x128xf32>
    %cst_68 = arith.constant dense<0.000000e+00> : vector<8x128xf32>
    %115 = vector.multi_reduction <add>, %114, %cst_68 [0] : vector<1x8x128xf32> to vector<8x128xf32>
    %116 = arith.addf %112, %115 : vector<8x128xf32>
    %c40_69 = arith.constant 40 : index
    %c0_70 = arith.constant 0 : index
    %117 = vector.load %arg4[%c40_69, %c0_70] : memref<80x128xf32, #tpu.memory_space<vmem>>, vector<8x128xf32>
    tpu.vector_store %arg4[%c40_69, %c0_70], %116 {strides = array<i32>} : memref<80x128xf32, #tpu.memory_space<vmem>>, vector<8x128xf32>,
    %c6_i32 = arith.constant 6 : i32
    %118 = vector.broadcast %c6_i32 : i32 to vector<1x8x128xi32>
    %119 = arith.cmpi eq, %32, %118 : vector<1x8x128xi32>
    %c48 = arith.constant 48 : index
    %c0_71 = arith.constant 0 : index
    %120 = vector.load %arg3[%c48, %c0_71] : memref<80x128xf32, #tpu.memory_space<vmem>>, vector<8x128xf32>
    %121 = arith.extui %119 : vector<1x8x128xi1> to vector<1x8x128xi32>
    %122 = arith.sitofp %121 : vector<1x8x128xi32> to vector<1x8x128xf32>
    %cst_72 = arith.constant dense<0.000000e+00> : vector<8x128xf32>
    %123 = vector.multi_reduction <add>, %122, %cst_72 [0] : vector<1x8x128xf32> to vector<8x128xf32>
    %124 = arith.addf %120, %123 : vector<8x128xf32>
    %c48_73 = arith.constant 48 : index
    %c0_74 = arith.constant 0 : index
    %125 = vector.load %arg3[%c48_73, %c0_74] : memref<80x128xf32, #tpu.memory_space<vmem>>, vector<8x128xf32>
    tpu.vector_store %arg3[%c48_73, %c0_74], %124 {strides = array<i32>} : memref<80x128xf32, #tpu.memory_space<vmem>>, vector<8x128xf32>,
    %c48_75 = arith.constant 48 : index
    %c0_76 = arith.constant 0 : index
    %126 = vector.load %arg4[%c48_75, %c0_76] : memref<80x128xf32, #tpu.memory_space<vmem>>, vector<8x128xf32>
    %cst_77 = arith.constant 0.000000e+00 : f32
    %127 = vector.broadcast %cst_77 : f32 to vector<1x8x128xf32>
    %128 = arith.select %119, %33, %127 : vector<1x8x128xi1>, vector<1x8x128xf32>
    %cst_78 = arith.constant dense<0.000000e+00> : vector<8x128xf32>
    %129 = vector.multi_reduction <add>, %128, %cst_78 [0] : vector<1x8x128xf32> to vector<8x128xf32>
    %130 = arith.addf %126, %129 : vector<8x128xf32>
    %c48_79 = arith.constant 48 : index
    %c0_80 = arith.constant 0 : index
    %131 = vector.load %arg4[%c48_79, %c0_80] : memref<80x128xf32, #tpu.memory_space<vmem>>, vector<8x128xf32>
    tpu.vector_store %arg4[%c48_79, %c0_80], %130 {strides = array<i32>} : memref<80x128xf32, #tpu.memory_space<vmem>>, vector<8x128xf32>,
    %c7_i32 = arith.constant 7 : i32
    %132 = vector.broadcast %c7_i32 : i32 to vector<1x8x128xi32>
    %133 = arith.cmpi eq, %32, %132 : vector<1x8x128xi32>
    %c56 = arith.constant 56 : index
    %c0_81 = arith.constant 0 : index
    %134 = vector.load %arg3[%c56, %c0_81] : memref<80x128xf32, #tpu.memory_space<vmem>>, vector<8x128xf32>
    %135 = arith.extui %133 : vector<1x8x128xi1> to vector<1x8x128xi32>
    %136 = arith.sitofp %135 : vector<1x8x128xi32> to vector<1x8x128xf32>
    %cst_82 = arith.constant dense<0.000000e+00> : vector<8x128xf32>
    %137 = vector.multi_reduction <add>, %136, %cst_82 [0] : vector<1x8x128xf32> to vector<8x128xf32>
    %138 = arith.addf %134, %137 : vector<8x128xf32>
    %c56_83 = arith.constant 56 : index
    %c0_84 = arith.constant 0 : index
    %139 = vector.load %arg3[%c56_83, %c0_84] : memref<80x128xf32, #tpu.memory_space<vmem>>, vector<8x128xf32>
    tpu.vector_store %arg3[%c56_83, %c0_84], %138 {strides = array<i32>} : memref<80x128xf32, #tpu.memory_space<vmem>>, vector<8x128xf32>,
    %c56_85 = arith.constant 56 : index
    %c0_86 = arith.constant 0 : index
    %140 = vector.load %arg4[%c56_85, %c0_86] : memref<80x128xf32, #tpu.memory_space<vmem>>, vector<8x128xf32>
    %cst_87 = arith.constant 0.000000e+00 : f32
    %141 = vector.broadcast %cst_87 : f32 to vector<1x8x128xf32>
    %142 = arith.select %133, %33, %141 : vector<1x8x128xi1>, vector<1x8x128xf32>
    %cst_88 = arith.constant dense<0.000000e+00> : vector<8x128xf32>
    %143 = vector.multi_reduction <add>, %142, %cst_88 [0] : vector<1x8x128xf32> to vector<8x128xf32>
    %144 = arith.addf %140, %143 : vector<8x128xf32>
    %c56_89 = arith.constant 56 : index
    %c0_90 = arith.constant 0 : index
    %145 = vector.load %arg4[%c56_89, %c0_90] : memref<80x128xf32, #tpu.memory_space<vmem>>, vector<8x128xf32>
    tpu.vector_store %arg4[%c56_89, %c0_90], %144 {strides = array<i32>} : memref<80x128xf32, #tpu.memory_space<vmem>>, vector<8x128xf32>,
    %c8_i32 = arith.constant 8 : i32
    %146 = vector.broadcast %c8_i32 : i32 to vector<1x8x128xi32>
    %147 = arith.cmpi eq, %32, %146 : vector<1x8x128xi32>
    %c64 = arith.constant 64 : index
    %c0_91 = arith.constant 0 : index
    %148 = vector.load %arg3[%c64, %c0_91] : memref<80x128xf32, #tpu.memory_space<vmem>>, vector<8x128xf32>
    %149 = arith.extui %147 : vector<1x8x128xi1> to vector<1x8x128xi32>
    %150 = arith.sitofp %149 : vector<1x8x128xi32> to vector<1x8x128xf32>
    %cst_92 = arith.constant dense<0.000000e+00> : vector<8x128xf32>
    %151 = vector.multi_reduction <add>, %150, %cst_92 [0] : vector<1x8x128xf32> to vector<8x128xf32>
    %152 = arith.addf %148, %151 : vector<8x128xf32>
    %c64_93 = arith.constant 64 : index
    %c0_94 = arith.constant 0 : index
    %153 = vector.load %arg3[%c64_93, %c0_94] : memref<80x128xf32, #tpu.memory_space<vmem>>, vector<8x128xf32>
    tpu.vector_store %arg3[%c64_93, %c0_94], %152 {strides = array<i32>} : memref<80x128xf32, #tpu.memory_space<vmem>>, vector<8x128xf32>,
    %c64_95 = arith.constant 64 : index
    %c0_96 = arith.constant 0 : index
    %154 = vector.load %arg4[%c64_95, %c0_96] : memref<80x128xf32, #tpu.memory_space<vmem>>, vector<8x128xf32>
    %cst_97 = arith.constant 0.000000e+00 : f32
    %155 = vector.broadcast %cst_97 : f32 to vector<1x8x128xf32>
    %156 = arith.select %147, %33, %155 : vector<1x8x128xi1>, vector<1x8x128xf32>
    %cst_98 = arith.constant dense<0.000000e+00> : vector<8x128xf32>
    %157 = vector.multi_reduction <add>, %156, %cst_98 [0] : vector<1x8x128xf32> to vector<8x128xf32>
    %158 = arith.addf %154, %157 : vector<8x128xf32>
    %c64_99 = arith.constant 64 : index
    %c0_100 = arith.constant 0 : index
    %159 = vector.load %arg4[%c64_99, %c0_100] : memref<80x128xf32, #tpu.memory_space<vmem>>, vector<8x128xf32>
    tpu.vector_store %arg4[%c64_99, %c0_100], %158 {strides = array<i32>} : memref<80x128xf32, #tpu.memory_space<vmem>>, vector<8x128xf32>,
    %c9_i32_101 = arith.constant 9 : i32
    %160 = vector.broadcast %c9_i32_101 : i32 to vector<1x8x128xi32>
    %161 = arith.cmpi eq, %32, %160 : vector<1x8x128xi32>
    %c72 = arith.constant 72 : index
    %c0_102 = arith.constant 0 : index
    %162 = vector.load %arg3[%c72, %c0_102] : memref<80x128xf32, #tpu.memory_space<vmem>>, vector<8x128xf32>
    %163 = arith.extui %161 : vector<1x8x128xi1> to vector<1x8x128xi32>
    %164 = arith.sitofp %163 : vector<1x8x128xi32> to vector<1x8x128xf32>
    %cst_103 = arith.constant dense<0.000000e+00> : vector<8x128xf32>
    %165 = vector.multi_reduction <add>, %164, %cst_103 [0] : vector<1x8x128xf32> to vector<8x128xf32>
    %166 = arith.addf %162, %165 : vector<8x128xf32>
    %c72_104 = arith.constant 72 : index
    %c0_105 = arith.constant 0 : index
    %167 = vector.load %arg3[%c72_104, %c0_105] : memref<80x128xf32, #tpu.memory_space<vmem>>, vector<8x128xf32>
    tpu.vector_store %arg3[%c72_104, %c0_105], %166 {strides = array<i32>} : memref<80x128xf32, #tpu.memory_space<vmem>>, vector<8x128xf32>,
    %c72_106 = arith.constant 72 : index
    %c0_107 = arith.constant 0 : index
    %168 = vector.load %arg4[%c72_106, %c0_107] : memref<80x128xf32, #tpu.memory_space<vmem>>, vector<8x128xf32>
    %cst_108 = arith.constant 0.000000e+00 : f32
    %169 = vector.broadcast %cst_108 : f32 to vector<1x8x128xf32>
    %170 = arith.select %161, %33, %169 : vector<1x8x128xi1>, vector<1x8x128xf32>
    %cst_109 = arith.constant dense<0.000000e+00> : vector<8x128xf32>
    %171 = vector.multi_reduction <add>, %170, %cst_109 [0] : vector<1x8x128xf32> to vector<8x128xf32>
    %172 = arith.addf %168, %171 : vector<8x128xf32>
    %c72_110 = arith.constant 72 : index
    %c0_111 = arith.constant 0 : index
    %173 = vector.load %arg4[%c72_110, %c0_111] : memref<80x128xf32, #tpu.memory_space<vmem>>, vector<8x128xf32>
    tpu.vector_store %arg4[%c72_110, %c0_111], %172 {strides = array<i32>} : memref<80x128xf32, #tpu.memory_space<vmem>>, vector<8x128xf32>,
    return
  }
  func.func @transform_0(%arg0: i32) -> (i32, i32) {
    %c0_i32 = arith.constant 0 : i32
    %c0_i32_0 = arith.constant 0 : i32
    return %arg0, %c0_i32 : i32, i32
  }
  func.func @transform_1(%arg0: i32) -> (i32, i32) {
    %c0_i32 = arith.constant 0 : i32
    %c0_i32_0 = arith.constant 0 : i32
    return %arg0, %c0_i32 : i32, i32
  }
  func.func @transform_2(%arg0: i32) -> (i32, i32) {
    %c0_i32 = arith.constant 0 : i32
    %c0_i32_0 = arith.constant 0 : i32
    %c0_i32_1 = arith.constant 0 : i32
    return %c0_i32, %c0_i32_0 : i32, i32
  }
  func.func @transform_3(%arg0: i32) -> (i32, i32) {
    %c0_i32 = arith.constant 0 : i32
    %c0_i32_0 = arith.constant 0 : i32
    %c0_i32_1 = arith.constant 0 : i32
    return %c0_i32, %c0_i32_0 : i32, i32
  }
}

</mosaic_0001>

<llo_original>
// kernel: tpu_custom_call.1
$region0: #{tpu_custom_call.1}
  #allocation0 [shape = 'u32[]', space=smem, size = 0x4, offset = 0x4, fixed_abs, tag = 'smem constant byte address 0x4 - core index']
  #allocation1 [shape = 'u32[72,128]{1,0:T(1,128)}', space=vmem, size = 0x9000, scoped, tag = 'internal scratch']
  %s0 = inlined_call_operand.hbm [shape: f32[8,128], index: 0, kind: input, shape index: {}]
  %s1 = inlined_call_operand.hbm [shape: bf16[8,128], index: 1, kind: input, shape index: {}]
  %s2 = inlined_call_operand.hbm [shape: f32[80,128], index: 2, kind: output, shape index: {0}]
  %s3 = inlined_call_operand.hbm [shape: f32[80,128], index: 3, kind: output, shape index: {1}]
  %4 = xla_tuple %s2, %s3
  %s5 = sld [smem:[#allocation0]]
  $region38: #{tpu_custom_call.1} parent=0
    _
  %s7 = ssub.s32 1, %s5
  %s8 = scalar_select 0, %s7, %s5
  $region1: #{tpu_custom_call.1} parent=0
    #allocation2 [shape = 'u8[4096]{0}', space=vmem, size = 0x1000, scoped, tag = 'input window, operand 0, single buffered']
    #allocation3 [shape = 's32[1]{0}', space=sflag, size = 0x4, scoped, tag = 'scoped memory for tpu_custom_call.1']
    #allocation4 [shape = 's32[1]{0}', space=sflag, size = 0x4, scoped, tag = 'scoped memory for tpu_custom_call.1']
    #allocation5 [shape = 'u8[2048]{0}', space=vmem, size = 0x800, scoped, tag = 'input window, operand 1, single buffered']
    #allocation6 [shape = 's32[1]{0}', space=sflag, size = 0x4, scoped, tag = 'scoped memory for tpu_custom_call.1']
    #allocation7 [shape = 'u8[40960]{0}', space=vmem, size = 0xa000, scoped, tag = 'output window, operand 0, single buffered']
    #allocation8 [shape = 'u8[40960]{0}', space=vmem, size = 0xa000, scoped, tag = 'output window, operand 1, single buffered']
    #allocation9 [shape = 's32[1]{0}', space=sflag, size = 0x4, scoped, tag = 'scoped memory for tpu_custom_call.1']
    %9 = vsyncpa [#allocation3], 0
    %10 = vsyncpa [#allocation6], 0
    %11 = vsyncpa [#allocation4], 0
    %12 = vsyncpa [#allocation9], 0
    // Predicated region
    $region2: #{tpu_custom_call.1} parent=1 // pred_check
      _
    $region3: #{tpu_custom_call.1} parent=1 // pred_check_branch
      %14 = sbr.rel (0) target = $region5
    $region4: #{tpu_custom_call.1} parent=1 // pred_region
      %16 = vsyncadd [#allocation3], 0
      %s18 = sshll.u32 %s0, 4
      %s19 = int_to_ptr.hbm [resolvable:$true] %s18
      %s20 = sshll.u32 [#allocation2], 4
      %s21 = int_to_ptr.vmem [resolvable:$true] %s20
      %23 = dma.hbm_to_vmem [thread:$0]  %s19, 128, %s21, [#allocation3]
    $region5: #{tpu_custom_call.1} parent=1 // pred_fallthru
      _
    // Predicated region
    $region6: #{tpu_custom_call.1} parent=1 // pred_check
      _
    $region7: #{tpu_custom_call.1} parent=1 // pred_check_branch
      %25 = sbr.rel (0) target = $region9
    $region8: #{tpu_custom_call.1} parent=1 // pred_region
      %27 = vsyncadd [#allocation6], 0
      %s29 = sshll.u32 %s1, 4
      %s30 = int_to_ptr.hbm [resolvable:$true] %s29
      %s31 = sshll.u32 [#allocation5], 4
      %s32 = int_to_ptr.vmem [resolvable:$true] %s31
      %34 = dma.hbm_to_vmem [thread:$0]  %s30, 64, %s32, [#allocation6]
    $region9: #{tpu_custom_call.1} parent=1 // pred_fallthru
      _
    // Predicated region
    $region10: #{tpu_custom_call.1} parent=1 // pred_check
      _
    $region11: #{tpu_custom_call.1} parent=1 // pred_check_branch
      %36 = sbr.rel (0) target = $region13
    $region12: #{tpu_custom_call.1} parent=1 // pred_region
      %38 = dma.done [#allocation3], 128
    $region13: #{tpu_custom_call.1} parent=1 // pred_fallthru
      _
    // Predicated region
    $region14: #{tpu_custom_call.1} parent=1 // pred_check
      _
    $region15: #{tpu_custom_call.1} parent=1 // pred_check_branch
      %40 = sbr.rel (0) target = $region17
    $region16: #{tpu_custom_call.1} parent=1 // pred_region
      %42 = dma.done [#allocation6], 64
    $region17: #{tpu_custom_call.1} parent=1 // pred_fallthru
      _
    %p43 = scmp.eq.s32.totalorder 0, 0
    // Predicated region
    $region18: #{tpu_custom_call.1} parent=1 // pred_check
      %p44 = pneg %p43
    $region19: #{tpu_custom_call.1} parent=1 // pred_check_branch
      %46 = sbr.rel (%p44) target = $region21
    $region20: #{tpu_custom_call.1} parent=1 // pred_region
      %47 = vst [vmem:[#allocation7] sm:$0xff] 0.0
      %48 = vst [vmem:[#allocation7 + $0x8] sm:$0xff] 0.0
      %49 = vst [vmem:[#allocation7 + $0x10] sm:$0xff] 0.0
      %50 = vst [vmem:[#allocation7 + $0x18] sm:$0xff] 0.0
      %51 = vst [vmem:[#allocation7 + $0x20] sm:$0xff] 0.0
      %52 = vst [vmem:[#allocation7 + $0x28] sm:$0xff] 0.0
      %53 = vst [vmem:[#allocation7 + $0x30] sm:$0xff] 0.0
      %54 = vst [vmem:[#allocation7 + $0x38] sm:$0xff] 0.0
      %55 = vst [vmem:[#allocation7 + $0x40] sm:$0xff] 0.0
      %56 = vst [vmem:[#allocation7 + $0x48] sm:$0xff] 0.0
      %57 = vst [vmem:[#allocation8] sm:$0xff] 0.0
      %58 = vst [vmem:[#allocation8 + $0x8] sm:$0xff] 0.0
      %59 = vst [vmem:[#allocation8 + $0x10] sm:$0xff] 0.0
      %60 = vst [vmem:[#allocation8 + $0x18] sm:$0xff] 0.0
      %61 = vst [vmem:[#allocation8 + $0x20] sm:$0xff] 0.0
      %62 = vst [vmem:[#allocation8 + $0x28] sm:$0xff] 0.0
      %63 = vst [vmem:[#allocation8 + $0x30] sm:$0xff] 0.0
      %64 = vst [vmem:[#allocation8 + $0x38] sm:$0xff] 0.0
      %65 = vst [vmem:[#allocation8 + $0x40] sm:$0xff] 0.0
      %66 = vst [vmem:[#allocation8 + $0x48] sm:$0xff] 0.0
    $region21: #{tpu_custom_call.1} parent=1 // pred_fallthru
      _
    %v67 = vld [vmem:[#allocation2] sm:$0xff]
    %v68 = vld [vmem:[#allocation5] sm:$0xf]
    %v69 = vunpack.c.l.bf16 %v68
    %v70 = vand.u32 2147483647, %v67
    %v71 = vsub.f32 0.0, %v70
    %v72 = vmul.f32 %v71, 1.442695
    %v73 = vpow.pop %v72
    %v74 = vadd.f32 %v73, 1.0
    %v75 = vrcp.pop %v74
    %vm76 = vcmp.ge.f32.partialorder %v67, 0.0
    %v77 = vmul.f32 %v73, %v75
    %v78 = vsel %vm76, %v75, %v77
    %v79 = vsub.f32 %v78, %v69
    %v80 = vand.u32 2147483647, %v79
    %v81 = vmax.f32 %v67, 0.0
    %v82 = vmul.f32 %v67, %v69
    %v83 = vsub.f32 %v81, %v82
    %v84 = vlog2.pop %v74
    %v85 = vmul.f32 %v84, 0.6931472
    %v86 = vadd.f32 %v83, %v85
    %v87 = vmul.f32 %v80, 10.0
    %v88 = vcvt.f32.s32.to.zero.pseudo %v87
    %vm89 = vcmp.lt.s32.totalorder %v88, 9
    %v90 = vsel %vm89, %v88, 9
    %vm91 = vcmp.eq.s32.totalorder %v90, 0
    %v92 = vld [vmem:[#allocation7] sm:$0xff]
    %v93 = vsel %vm91, 1, 0
    %v94 = vcvt.s32.f32 %v93
    %v95 = vadd.f32 %v94, 0.0
    %v96 = vadd.f32 %v92, %v95
    %97 = vst [vmem:[#allocation7] sm:$0xff] %v96
    %v98 = vld [vmem:[#allocation8] sm:$0xff]
    %v99 = vsel %vm91, %v86, 0.0
    %v100 = vadd.f32 %v99, 0.0
    %v101 = vadd.f32 %v98, %v100
    %102 = vst [vmem:[#allocation8] sm:$0xff] %v101
    %vm103 = vcmp.eq.s32.totalorder %v90, 1
    %v104 = vld [vmem:[#allocation7 + $0x8] sm:$0xff]
    %v105 = vsel %vm103, 1, 0
    %v106 = vcvt.s32.f32 %v105
    %v107 = vadd.f32 %v106, 0.0
    %v108 = vadd.f32 %v104, %v107
    %109 = vst [vmem:[#allocation7 + $0x8] sm:$0xff] %v108
    %v110 = vld [vmem:[#allocation8 + $0x8] sm:$0xff]
    %v111 = vsel %vm103, %v86, 0.0
    %v112 = vadd.f32 %v111, 0.0
    %v113 = vadd.f32 %v110, %v112
    %114 = vst [vmem:[#allocation8 + $0x8] sm:$0xff] %v113
    %vm115 = vcmp.eq.s32.totalorder %v90, 2
    %v116 = vld [vmem:[#allocation7 + $0x10] sm:$0xff]
    %v117 = vsel %vm115, 1, 0
    %v118 = vcvt.s32.f32 %v117
    %v119 = vadd.f32 %v118, 0.0
    %v120 = vadd.f32 %v116, %v119
    %121 = vst [vmem:[#allocation7 + $0x10] sm:$0xff] %v120
    %v122 = vld [vmem:[#allocation8 + $0x10] sm:$0xff]
    %v123 = vsel %vm115, %v86, 0.0
    %v124 = vadd.f32 %v123, 0.0
    %v125 = vadd.f32 %v122, %v124
    %126 = vst [vmem:[#allocation8 + $0x10] sm:$0xff] %v125
    %vm127 = vcmp.eq.s32.totalorder %v90, 3
    %v128 = vld [vmem:[#allocation7 + $0x18] sm:$0xff]
    %v129 = vsel %vm127, 1, 0
    %v130 = vcvt.s32.f32 %v129
    %v131 = vadd.f32 %v130, 0.0
    %v132 = vadd.f32 %v128, %v131
    %133 = vst [vmem:[#allocation7 + $0x18] sm:$0xff] %v132
    %v134 = vld [vmem:[#allocation8 + $0x18] sm:$0xff]
    %v135 = vsel %vm127, %v86, 0.0
    %v136 = vadd.f32 %v135, 0.0
    %v137 = vadd.f32 %v134, %v136
    %138 = vst [vmem:[#allocation8 + $0x18] sm:$0xff] %v137
    %vm139 = vcmp.eq.s32.totalorder %v90, 4
    %v140 = vld [vmem:[#allocation7 + $0x20] sm:$0xff]
    %v141 = vsel %vm139, 1, 0
    %v142 = vcvt.s32.f32 %v141
    %v143 = vadd.f32 %v142, 0.0
    %v144 = vadd.f32 %v140, %v143
    %145 = vst [vmem:[#allocation7 + $0x20] sm:$0xff] %v144
    %v146 = vld [vmem:[#allocation8 + $0x20] sm:$0xff]
    %v147 = vsel %vm139, %v86, 0.0
    %v148 = vadd.f32 %v147, 0.0
    %v149 = vadd.f32 %v146, %v148
    %150 = vst [vmem:[#allocation8 + $0x20] sm:$0xff] %v149
    %vm151 = vcmp.eq.s32.totalorder %v90, 5
    %v152 = vld [vmem:[#allocation7 + $0x28] sm:$0xff]
    %v153 = vsel %vm151, 1, 0
    %v154 = vcvt.s32.f32 %v153
    %v155 = vadd.f32 %v154, 0.0
    %v156 = vadd.f32 %v152, %v155
    %157 = vst [vmem:[#allocation7 + $0x28] sm:$0xff] %v156
    %v158 = vld [vmem:[#allocation8 + $0x28] sm:$0xff]
    %v159 = vsel %vm151, %v86, 0.0
    %v160 = vadd.f32 %v159, 0.0
    %v161 = vadd.f32 %v158, %v160
    %162 = vst [vmem:[#allocation8 + $0x28] sm:$0xff] %v161
    %vm163 = vcmp.eq.s32.totalorder %v90, 6
    %v164 = vld [vmem:[#allocation7 + $0x30] sm:$0xff]
    %v165 = vsel %vm163, 1, 0
    %v166 = vcvt.s32.f32 %v165
    %v167 = vadd.f32 %v166, 0.0
    %v168 = vadd.f32 %v164, %v167
    %169 = vst [vmem:[#allocation7 + $0x30] sm:$0xff] %v168
    %v170 = vld [vmem:[#allocation8 + $0x30] sm:$0xff]
    %v171 = vsel %vm163, %v86, 0.0
    %v172 = vadd.f32 %v171, 0.0
    %v173 = vadd.f32 %v170, %v172
    %174 = vst [vmem:[#allocation8 + $0x30] sm:$0xff] %v173
    %vm175 = vcmp.eq.s32.totalorder %v90, 7
    %v176 = vld [vmem:[#allocation7 + $0x38] sm:$0xff]
    %v177 = vsel %vm175, 1, 0
    %v178 = vcvt.s32.f32 %v177
    %v179 = vadd.f32 %v178, 0.0
    %v180 = vadd.f32 %v176, %v179
    %181 = vst [vmem:[#allocation7 + $0x38] sm:$0xff] %v180
    %v182 = vld [vmem:[#allocation8 + $0x38] sm:$0xff]
    %v183 = vsel %vm175, %v86, 0.0
    %v184 = vadd.f32 %v183, 0.0
    %v185 = vadd.f32 %v182, %v184
    %186 = vst [vmem:[#allocation8 + $0x38] sm:$0xff] %v185
    %vm187 = vcmp.eq.s32.totalorder %v90, 8
    %v188 = vld [vmem:[#allocation7 + $0x40] sm:$0xff]
    %v189 = vsel %vm187, 1, 0
    %v190 = vcvt.s32.f32 %v189
    %v191 = vadd.f32 %v190, 0.0
    %v192 = vadd.f32 %v188, %v191
    %193 = vst [vmem:[#allocation7 + $0x40] sm:$0xff] %v192
    %v194 = vld [vmem:[#allocation8 + $0x40] sm:$0xff]
    %v195 = vsel %vm187, %v86, 0.0
    %v196 = vadd.f32 %v195, 0.0
    %v197 = vadd.f32 %v194, %v196
    %198 = vst [vmem:[#allocation8 + $0x40] sm:$0xff] %v197
    %vm199 = vcmp.eq.s32.totalorder %v90, 9
    %v200 = vld [vmem:[#allocation7 + $0x48] sm:$0xff]
    %v201 = vsel %vm199, 1, 0
    %v202 = vcvt.s32.f32 %v201
    %v203 = vadd.f32 %v202, 0.0
    %v204 = vadd.f32 %v200, %v203
    %205 = vst [vmem:[#allocation7 + $0x48] sm:$0xff] %v204
    %v206 = vld [vmem:[#allocation8 + $0x48] sm:$0xff]
    %v207 = vsel %vm199, %v86, 0.0
    %v208 = vadd.f32 %v207, 0.0
    %v209 = vadd.f32 %v206, %v208
    %210 = vst [vmem:[#allocation8 + $0x48] sm:$0xff] %v209
    // Predicated region
    $region22: #{tpu_custom_call.1} parent=1 // pred_check
      _
    $region23: #{tpu_custom_call.1} parent=1 // pred_check_branch
      %212 = sbr.rel (0) target = $region25
    $region24: #{tpu_custom_call.1} parent=1 // pred_region
      %214 = vsyncadd [#allocation4], 0
      %s215 = sshll.u32 [#allocation7], 4
      %s216 = int_to_ptr.vmem [resolvable:$true] %s215
      %s217 = sshll.u32 %s2, 4
      %s218 = int_to_ptr.hbm [resolvable:$true] %s217
      %223 = dma.vmem_to_hbm [thread:$0]  %s216, 1280, %s218, [#allocation4], 128, 128, 8
    $region25: #{tpu_custom_call.1} parent=1 // pred_fallthru
      _
    // Predicated region
    $region26: #{tpu_custom_call.1} parent=1 // pred_check
      _
    $region27: #{tpu_custom_call.1} parent=1 // pred_check_branch
      %225 = sbr.rel (0) target = $region29
    $region28: #{tpu_custom_call.1} parent=1 // pred_region
      %227 = vsyncadd [#allocation9], 0
      %s228 = sshll.u32 [#allocation8], 4
      %s229 = int_to_ptr.vmem [resolvable:$true] %s228
      %s230 = sshll.u32 %s3, 4
      %s231 = int_to_ptr.hbm [resolvable:$true] %s230
      %236 = dma.vmem_to_hbm [thread:$0]  %s229, 1280, %s231, [#allocation9], 128, 128, 8
    $region29: #{tpu_custom_call.1} parent=1 // pred_fallthru
      _
    // Predicated region
    $region30: #{tpu_custom_call.1} parent=1 // pred_check
      _
    $region31: #{tpu_custom_call.1} parent=1 // pred_check_branch
      %238 = sbr.rel (0) target = $region33
    $region32: #{tpu_custom_call.1} parent=1 // pred_region
      %240 = dma.done [#allocation4], 1280
    $region33: #{tpu_custom_call.1} parent=1 // pred_fallthru
      _
    // Predicated region
    $region34: #{tpu_custom_call.1} parent=1 // pred_check
      _
    $region35: #{tpu_custom_call.1} parent=1 // pred_check_branch
      %242 = sbr.rel (0) target = $region37
    $region36: #{tpu_custom_call.1} parent=1 // pred_region
      %244 = dma.done [#allocation9], 1280
    $region37: #{tpu_custom_call.1} parent=1 // pred_fallthru
      _
    %245 = vsyncpa [#allocation3], 1
    %246 = vsyncpa [#allocation6], 1
    %247 = vsyncpa [#allocation4], 1
    %248 = vsyncpa [#allocation9], 1

</llo_original>
